<compile_context>
chip_gen: v7x
topology: tpu7x:2x2x1
jax: 0.10.0
libtpu: 0.0.40
codegen_flags: <defaults>
</compile_context>

<pallas_src>
import numpy as np
import jax
import jax.numpy as jnp
from jax import lax
from jax.experimental import pallas as pl
from jax.experimental.pallas import tpu as pltpu


def make_hmm_loss_kernel(N_true, TILE_N, C, max_m, s, gamma, ldam, needs_mask):
    """Build the fused HMMLoss tile kernel (margins + cross-entropy partial sum)."""

    def kernel(*refs):
        if ldam:
            x_ref, tgt_ref, xt0_ref, mlist_ref, out_ref = refs
        else:
            x_ref, tgt_ref, xt0_ref, out_ref = refs

        x = x_ref[...].astype(jnp.float32)            # (TILE_N, C)
        tgt = tgt_ref[...]                            # (TILE_N, 1) int32
        min_pos = xt0_ref[...].astype(jnp.float32)    # (TILE_N, 1) = x[:, target[0]]

        # one-hot of the per-row target (equivalent of scatter_ in torch)
        col = lax.broadcasted_iota(jnp.int32, (TILE_N, C), 1)
        index_f = (col == tgt).astype(jnp.float32)    # (TILE_N, C)

        if ldam:
            m_list = mlist_ref[...].astype(jnp.float32)                    # (1, C)
            batch_m = jnp.sum(m_list * index_f, axis=1, keepdims=True)     # (TILE_N, 1)
            max_m_arr = max_m - batch_m
        else:
            max_m_arr = max_m  # static python float; constant-folded

        # per-row target logit (pre-margin) and max of non-target logits
        x_t = jnp.sum(x * index_f, axis=1, keepdims=True)                  # (TILE_N, 1)
        neg = x * (1.0 - index_f)                                          # target col zeroed
        max_neg = jnp.max(neg, axis=1, keepdims=True)                      # (TILE_N, 1)

        # hybrid margin (obj_margins)
        fg = jnp.maximum(min_pos - max_neg, 0.0)
        batch_fg = jnp.exp(-fg - max_m_arr * gamma) * (fg > 0.0).astype(jnp.float32)
        bg = jnp.maximum(max_neg - min_pos, 0.0)
        batch_ng = jnp.exp(-bg - max_m_arr) * (bg > 0.0).astype(jnp.float32)
        batch_hmm = batch_fg + batch_ng                                    # (TILE_N, 1)

        # margin only at the target column: output = x - batch_hmm * index_f
        t_margin = x_t - batch_hmm                                         # target logit after margin
        # mx >= true row max of s*output:
        #   max_neg >= max of non-target x (and >= 0), target column equals t_margin.
        mx = s * jnp.maximum(max_neg, t_margin)                            # (TILE_N, 1)
        z = jnp.exp(s * (x - batch_hmm * index_f) - mx)                    # (TILE_N, C)
        lse = mx + jnp.log(jnp.sum(z, axis=1, keepdims=True))              # (TILE_N, 1)
        per_sample = lse - s * t_margin                                    # (TILE_N, 1)

        if needs_mask:
            row = pl.program_id(0) * TILE_N + lax.broadcasted_iota(
                jnp.int32, (TILE_N, 1), 0)
            per_sample = jnp.where(row < N_true, per_sample, 0.0)

        psum = jnp.sum(per_sample, axis=0, keepdims=True)                  # (1, 1)
        # lane-dense (1, 128) partial-sum block (unmasked lane store)
        out_ref[...] = jnp.broadcast_to(psum, (1, 128)).astype(jnp.float32)

    return kernel


def hmm_loss_pallas(x, target, m_list, max_m=0.5, s=30.0, gamma=1.1,
                    ldam=False, tile_n=None):
    N, C = x.shape

    # --- tile choice: ~2 MiB of x per tile (double-buffered -> ~4 MiB),
    # comfortably under v7x's 64 MiB VMEM / 32 MiB scoped default.
    if tile_n is None:
        budget_rows = max(8, (2 * 1024 * 1024) // (C * 4))
        tile_n = min(1024, budget_rows)
    tile_n = min(int(tile_n), ((N + 7) // 8) * 8)
    tile_n = max(8, (tile_n // 8) * 8)
    num_tiles = (N + tile_n - 1) // tile_n
    N_pad = num_tiles * tile_n

    # min_pos is x[:, target[0]] for EVERY row (faithful to the reference's
    # labels[0] indexing).  Extract the column once here so the kernel avoids a
    # full (TILE_N, C) one-hot multiply + row reduction per tile.
    x_t0 = lax.dynamic_slice_in_dim(x, target[0].astype(jnp.int32), 1, axis=1)  # (N, 1)

    if N_pad != N:
        pad = N_pad - N
        x = jnp.pad(x, ((0, pad), (0, 0)))
        x_t0 = jnp.pad(x_t0, ((0, pad), (0, 0)))
        target = jnp.pad(target, (0, pad))
    tgt2 = target.reshape(N_pad, 1).astype(jnp.int32)

    kernel = make_hmm_loss_kernel(
        N, tile_n, C, float(max_m), float(s), float(gamma), bool(ldam), N_pad != N)

    in_specs = [
        pl.BlockSpec((tile_n, C), lambda i: (i, 0)),   # x tile
        pl.BlockSpec((tile_n, 1), lambda i: (i, 0)),   # targets
        pl.BlockSpec((tile_n, 1), lambda i: (i, 0)),   # x[:, target[0]]
    ]
    args = [x, tgt2, x_t0]
    if ldam:
        in_specs.append(pl.BlockSpec((1, C), lambda i: (0, 0)))
        args.append(m_list.reshape(1, C).astype(jnp.float32))

    x_bytes = int(N_pad) * C * int(np.dtype(x.dtype).itemsize)
    cost = pl.CostEstimate(
        flops=20 * N_pad * C,
        transcendentals=N_pad * C,
        bytes_accessed=x_bytes + 8 * N_pad + 512 * num_tiles,
    )
    tile_bytes = tile_n * C * 4
    vmem_limit = int(min(64 * 2**20, max(16 * 2**20, 8 * tile_bytes)))

    out = pl.pallas_call(
        kernel,
        out_shape=jax.ShapeDtypeStruct((1, num_tiles * 128), jnp.float32),
        grid_spec=pltpu.PrefetchScalarGridSpec(
            num_scalar_prefetch=0,
            grid=(num_tiles,),
            in_specs=in_specs,
            out_specs=pl.BlockSpec((1, 128), lambda i: (0, i)),
        ),
        compiler_params=pltpu.CompilerParams(
            dimension_semantics=("parallel",),   # megacore-shardable on v7x
            vmem_limit_bytes=vmem_limit,
        ),
        cost_estimate=cost,
    )(*args)

    partials = out.reshape(num_tiles, 128)[:, 0]
    return jnp.sum(partials) / jnp.float32(N)


def hmm_loss_ref(x, target, m_list, max_m=0.5, s=30.0, gamma=1.1, ldam=False):
    """Pure-JAX reference mirroring the PyTorch semantics (for verification)."""
    N, C = x.shape
    x = x.astype(jnp.float32)
    index_f = jax.nn.one_hot(target, C, dtype=jnp.float32)
    batch_m = jnp.sum(m_list[None, :] * index_f, axis=1, keepdims=True)
    max_m_v = (max_m - batch_m) if ldam else max_m
    neg = x * (1.0 - index_f)
    max_neg = jnp.max(neg, axis=1, keepdims=True)
    min_pos = x[:, target[0]][:, None]
    fg = jnp.maximum(min_pos - max_neg, 0.0)
    batch_fg = jnp.exp(-fg - max_m_v * gamma) * (fg > 0)
    bg = jnp.maximum(max_neg - min_pos, 0.0)
    batch_ng = jnp.exp(-bg - max_m_v) * (bg > 0)
    batch_hmm = batch_fg + batch_ng
    output = jnp.where(index_f > 0, x - batch_hmm, x)
    logits = s * output
    logz = jax.nn.logsumexp(logits, axis=1)
    logit_t = jnp.take_along_axis(logits, target[:, None], axis=1)[:, 0]
    return jnp.mean(logz - logit_t)


if __name__ == "__main__":
    # small demo: 20 samples, 16 classes (exercises multi-tile grid + remainder masking)
    N, C = 20, 16
    key = jax.random.PRNGKey(0)
    kx, kt = jax.random.split(key)
    x = jax.random.normal(kx, (N, C), dtype=jnp.float32)
    target = jax.random.randint(kt, (N,), 0, C, dtype=jnp.int32)

    # deterministic parameter init (cls_num_list from __init__)
    cls_num_list = np.arange(1, C + 1, dtype=np.float64) * 10.0
    m = 1.0 / np.sqrt(np.sqrt(cls_num_list))
    m = m * (0.5 / np.max(m))
    m_list = jnp.asarray(m, dtype=jnp.float32)

    # explicit small tile -> 3 grid tiles with a masked remainder; both ldam paths
    for ldam in (False, True):
        loss = jax.block_until_ready(
            hmm_loss_pallas(x, target, m_list, ldam=ldam, tile_n=8))
        ref = jax.block_until_ready(hmm_loss_ref(x, target, m_list, ldam=ldam))
        assert np.isfinite(float(loss))
        assert abs(float(loss) - float(ref)) <= 1e-3 + 1e-4 * abs(float(ref)), (
            ldam, float(loss), float(ref))

    # auto tile-size path (single padded tile)
    loss2 = jax.block_until_ready(hmm_loss_pallas(x, target, m_list))
    ref2 = hmm_loss_ref(x, target, m_list)
    assert abs(float(loss2) - float(ref2)) <= 1e-3 + 1e-4 * abs(float(ref2))

    print("KERNEL_OK")
</pallas_src>

<mosaic_0001>
module attributes {stable_mosaic.version = 11 : i64} {
  func.func @kernel(%arg0: i32, %arg1: memref<8x16xf32, #tpu.memory_space<vmem>>, %arg2: memref<8x1xi32, #tpu.memory_space<vmem>>, %arg3: memref<8x1xf32, #tpu.memory_space<vmem>>, %arg4: memref<1x128xf32, #tpu.memory_space<vmem>>) attributes {dimension_semantics = [#tpu.dimension_semantics<parallel>], iteration_bounds = array<i64: 3>, scalar_prefetch = 0 : i64, scratch_operands = 0 : i64, tpu.core_type = #tpu.core_type<tc>, window_params = [{transform_indices = @transform_0, window_bounds = array<i64: 8, 16>}, {transform_indices = @transform_1, window_bounds = array<i64: 8, 1>}, {transform_indices = @transform_2, window_bounds = array<i64: 8, 1>}, {transform_indices = @transform_3, window_bounds = array<i64: 1, 128>}]} {
    %c0 = arith.constant 0 : index
    %c0_0 = arith.constant 0 : index
    %0 = vector.load %arg1[%c0, %c0_0] : memref<8x16xf32, #tpu.memory_space<vmem>>, vector<8x16xf32>
    %c0_1 = arith.constant 0 : index
    %c0_2 = arith.constant 0 : index
    %1 = vector.load %arg2[%c0_1, %c0_2] : memref<8x1xi32, #tpu.memory_space<vmem>>, vector<8x1xi32>
    %c0_3 = arith.constant 0 : index
    %c0_4 = arith.constant 0 : index
    %2 = vector.load %arg3[%c0_3, %c0_4] : memref<8x1xf32, #tpu.memory_space<vmem>>, vector<8x1xf32>
    %3 = tpu.iota {dimensions = array<i32: 1>} : vector<8x16xi32>
    %4 = vector.broadcast %1 : vector<8x1xi32> to vector<8x16xi32>
    %5 = arith.cmpi eq, %3, %4 : vector<8x16xi32>
    %6 = arith.extui %5 : vector<8x16xi1> to vector<8x16xi32>
    %7 = arith.sitofp %6 : vector<8x16xi32> to vector<8x16xf32>
    %8 = arith.mulf %0, %7 : vector<8x16xf32>
    %cst = arith.constant dense<0.000000e+00> : vector<8xf32>
    %9 = vector.multi_reduction <add>, %8, %cst [1] : vector<8x16xf32> to vector<8xf32>
    %10 = vector.shape_cast %9 : vector<8xf32> to vector<8x1xf32>
    %cst_5 = arith.constant 1.000000e+00 : f32
    %11 = vector.broadcast %cst_5 : f32 to vector<8x16xf32>
    %12 = arith.subf %11, %7 : vector<8x16xf32>
    %13 = arith.mulf %0, %12 : vector<8x16xf32>
    %cst_6 = arith.constant dense<0xFF800000> : vector<8xf32>
    %14 = vector.multi_reduction <maximumf>, %13, %cst_6 [1] : vector<8x16xf32> to vector<8xf32>
    %15 = vector.shape_cast %14 : vector<8xf32> to vector<8x1xf32>
    %16 = arith.subf %2, %15 : vector<8x1xf32>
    %cst_7 = arith.constant 0.000000e+00 : f32
    %17 = vector.broadcast %cst_7 : f32 to vector<8x1xf32>
    %18 = arith.maximumf %16, %17 : vector<8x1xf32>
    %cst_8 = arith.constant 0.000000e+00 : f32
    %19 = vector.broadcast %cst_8 : f32 to vector<8x1xf32>
    %20 = arith.subf %19, %18 : vector<8x1xf32>
    %cst_9 = arith.constant 5.500000e-01 : f32
    %21 = vector.broadcast %cst_9 : f32 to vector<8x1xf32>
    %22 = arith.subf %20, %21 : vector<8x1xf32>
    %23 = math.exp %22 : vector<8x1xf32>
    %cst_10 = arith.constant 0.000000e+00 : f32
    %24 = vector.broadcast %cst_10 : f32 to vector<8x1xf32>
    %25 = arith.cmpf ogt, %18, %24 : vector<8x1xf32>
    %26 = arith.extui %25 : vector<8x1xi1> to vector<8x1xi32>
    %27 = arith.sitofp %26 : vector<8x1xi32> to vector<8x1xf32>
    %28 = arith.mulf %23, %27 : vector<8x1xf32>
    %29 = arith.subf %15, %2 : vector<8x1xf32>
    %cst_11 = arith.constant 0.000000e+00 : f32
    %30 = vector.broadcast %cst_11 : f32 to vector<8x1xf32>
    %31 = arith.maximumf %29, %30 : vector<8x1xf32>
    %cst_12 = arith.constant 0.000000e+00 : f32
    %32 = vector.broadcast %cst_12 : f32 to vector<8x1xf32>
    %33 = arith.subf %32, %31 : vector<8x1xf32>
    %cst_13 = arith.constant 5.000000e-01 : f32
    %34 = vector.broadcast %cst_13 : f32 to vector<8x1xf32>
    %35 = arith.subf %33, %34 : vector<8x1xf32>
    %36 = math.exp %35 : vector<8x1xf32>
    %cst_14 = arith.constant 0.000000e+00 : f32
    %37 = vector.broadcast %cst_14 : f32 to vector<8x1xf32>
    %38 = arith.cmpf ogt, %31, %37 : vector<8x1xf32>
    %39 = arith.extui %38 : vector<8x1xi1> to vector<8x1xi32>
    %40 = arith.sitofp %39 : vector<8x1xi32> to vector<8x1xf32>
    %41 = arith.mulf %36, %40 : vector<8x1xf32>
    %42 = arith.addf %28, %41 : vector<8x1xf32>
    %43 = arith.subf %10, %42 : vector<8x1xf32>
    %44 = arith.maximumf %15, %43 : vector<8x1xf32>
    %cst_15 = arith.constant 3.000000e+01 : f32
    %45 = vector.broadcast %cst_15 : f32 to vector<8x1xf32>
    %46 = arith.mulf %45, %44 : vector<8x1xf32>
    %47 = vector.broadcast %42 : vector<8x1xf32> to vector<8x16xf32>
    %48 = arith.mulf %47, %7 : vector<8x16xf32>
    %49 = arith.subf %0, %48 : vector<8x16xf32>
    %cst_16 = arith.constant 3.000000e+01 : f32
    %50 = vector.broadcast %cst_16 : f32 to vector<8x16xf32>
    %51 = arith.mulf %50, %49 : vector<8x16xf32>
    %52 = vector.broadcast %46 : vector<8x1xf32> to vector<8x16xf32>
    %53 = arith.subf %51, %52 : vector<8x16xf32>
    %54 = math.exp %53 : vector<8x16xf32>
    %cst_17 = arith.constant dense<0.000000e+00> : vector<8xf32>
    %55 = vector.multi_reduction <add>, %54, %cst_17 [1] : vector<8x16xf32> to vector<8xf32>
    %56 = vector.shape_cast %55 : vector<8xf32> to vector<8x1xf32>
    %57 = math.log %56 : vector<8x1xf32>
    %58 = arith.addf %46, %57 : vector<8x1xf32>
    %cst_18 = arith.constant 3.000000e+01 : f32
    %59 = vector.broadcast %cst_18 : f32 to vector<8x1xf32>
    %60 = arith.mulf %59, %43 : vector<8x1xf32>
    %61 = arith.subf %58, %60 : vector<8x1xf32>
    %c8_i32 = arith.constant 8 : i32
    %62 = arith.muli %arg0, %c8_i32 : i32
    %63 = tpu.iota {dimensions = array<i32: 0>} : vector<8x1xi32>
    %64 = vector.broadcast %62 : i32 to vector<8x1xi32>
    %65 = arith.addi %64, %63 : vector<8x1xi32>
    %c20_i32 = arith.constant 20 : i32
    %66 = vector.broadcast %c20_i32 : i32 to vector<8x1xi32>
    %67 = arith.cmpi slt, %65, %66 : vector<8x1xi32>
    %cst_19 = arith.constant 0.000000e+00 : f32
    %68 = vector.broadcast %cst_19 : f32 to vector<8x1xf32>
    %69 = arith.select %67, %61, %68 : vector<8x1xi1>, vector<8x1xf32>
    %cst_20 = arith.constant dense<0.000000e+00> : vector<1xf32>
    %70 = vector.multi_reduction <add>, %69, %cst_20 [0] : vector<8x1xf32> to vector<1xf32>
    %71 = vector.shape_cast %70 : vector<1xf32> to vector<1x1xf32>
    %72 = vector.shape_cast %71 : vector<1x1xf32> to vector<1x1xf32>
    %73 = vector.broadcast %72 : vector<1x1xf32> to vector<1x128xf32>
    %c0_21 = arith.constant 0 : index
    %c0_22 = arith.constant 0 : index
    %74 = vector.load %arg4[%c0_21, %c0_22] : memref<1x128xf32, #tpu.memory_space<vmem>>, vector<1x128xf32>
    tpu.vector_store %arg4[%c0_21, %c0_22], %73 {strides = array<i32>} : memref<1x128xf32, #tpu.memory_space<vmem>>, vector<1x128xf32>,
    return
  }
  func.func @transform_0(%arg0: i32) -> (i32, i32) {
    %c0_i32 = arith.constant 0 : i32
    %c0_i32_0 = arith.constant 0 : i32
    return %arg0, %c0_i32 : i32, i32
  }
  func.func @transform_1(%arg0: i32) -> (i32, i32) {
    %c0_i32 = arith.constant 0 : i32
    %c0_i32_0 = arith.constant 0 : i32
    return %arg0, %c0_i32 : i32, i32
  }
  func.func @transform_2(%arg0: i32) -> (i32, i32) {
    %c0_i32 = arith.constant 0 : i32
    %c0_i32_0 = arith.constant 0 : i32
    return %arg0, %c0_i32 : i32, i32
  }
  func.func @transform_3(%arg0: i32) -> (i32, i32) {
    %c0_i32 = arith.constant 0 : i32
    %c0_i32_0 = arith.constant 0 : i32
    return %c0_i32, %arg0 : i32, i32
  }
}

</mosaic_0001>

<llo_original>
// kernel: tpu_custom_call.1
$region0: #{tpu_custom_call.1}
  #allocation0 [shape = 'u32[]', space=smem, size = 0x4, offset = 0x4, fixed_abs, tag = 'smem constant byte address 0x4 - core index']
  #allocation1 [shape = 'u32[144,128]{1,0:T(1,128)}', space=vmem, size = 0x12000, scoped, tag = 'internal scratch']
  %s0 = inlined_call_operand.vmem [shape: f32[24,16], index: 0, kind: input, shape index: {}]
  %s1 = inlined_call_operand.vmem [shape: s32[24,1], index: 1, kind: input, shape index: {}]
  %s2 = inlined_call_operand.vmem [shape: f32[24,1], index: 2, kind: input, shape index: {}]
  %s3 = inlined_call_operand.hbm [shape: f32[1,384], index: 3, kind: output, shape index: {}]
  %s4 = sld [smem:[#allocation0]]
  $region45: #{tpu_custom_call.1} parent=0
    _
  %s6 = ssub.s32 1, %s4
  %s7 = scalar_select 0, %s6, %s4
  $region1: #{tpu_custom_call.1} parent=0
    #allocation2 [shape = 'u8[1024]{0}', space=vmem, size = 0x400, scoped, tag = 'output window, operand 0']
    #allocation3 [shape = 's32[2]{0}', space=sflag, size = 0x8, scoped, tag = 'scoped memory for tpu_custom_call.1']
    %8 = vsyncpa [#allocation3], 0
    %s9 = scalar_lea.sflag [#allocation3], 1
    %10 = vsyncpa %s9, 0
    loop: start=0, step=1, limit=5
    $region2: #{tpu_custom_call.1} parent=1 // loop_pre_header
      _
    $region3: #{tpu_custom_call.1} parent=1 // loop_header
      %s12 = sphi 0, %s16
      %p13 = scmp.ge.s32.totalorder %s12, 5
      %s22 = sphi 0, %s24
      %s25 = sphi 0, %s22
      %s26 = sphi 0, %s25
      %s42 = sphi 0, %s26
      %s48 = sphi 0, %s50
      %s51 = sphi 0, %s48
      %s52 = sphi 0, %s51
      %s68 = sphi 0, %s52
      %s74 = sphi 0, %s76
      %s77 = sphi 0, %s74
      %s78 = sphi 0, %s77
      %s94 = sphi 0, %s78
      %s100 = sphi 0, %s102
      %s103 = sphi 0, %s100
      %s104 = sphi 0, %s103
      %s120 = sphi 0, %s104
    $region4: #{tpu_custom_call.1} parent=1 // loop_header_branch
      %15 = sbr.rel (%p13) target = $region8
    $region5: #{tpu_custom_call.1} parent=1 // loop_body
      %s17 = ssub.s32 %s12, 1
      %s18 = ssub.s32 %s12, 2
      %s19 = sadd.s32 %s12, 1
      %s20 = ssub.s32 %s12, %s19
      %p21 = scmp.eq.s32.totalorder %s20, 0
      %s23 = sadd.s32 %s22, 1
      %s24 = scalar_select %p21, %s22, %s23
      %p27 = pneg %p21
      %p28 = scmp.eq.s32.totalorder %s12, 2
      %p29 = por %p27, %p28
      %p30 = scmp.ne.s32.totalorder %s22, %s25
      %p31 = scmp.eq.s32.totalorder %s12, 0
      %p32 = por %p30, %p31
      %p33 = scmp.ne.s32.totalorder %s22, %s25
      %p34 = scmp.eq.s32.totalorder %s17, 2
      %p35 = por %p33, %p34
      %p36 = scmp.ne.s32.totalorder %s25, %s26
      %p37 = scmp.eq.s32.totalorder %s17, 0
      %p38 = por %p36, %p37
      %p39 = scmp.ne.s32.totalorder %s25, %s26
      %p40 = scmp.eq.s32.totalorder %s18, 2
      %p41 = por %p39, %p40
      %p43 = scmp.ne.s32.totalorder %s26, %s42
      %p44 = scmp.eq.s32.totalorder %s18, 0
      %p45 = por %p43, %p44
      %s46 = ssub.s32 %s12, %s19
      %p47 = scmp.eq.s32.totalorder %s46, 0
      %s49 = sadd.s32 %s48, 1
      %s50 = scalar_select %p47, %s48, %s49
      %p53 = pneg %p47
      %p54 = scmp.eq.s32.totalorder %s12, 2
      %p55 = por %p53, %p54
      %p56 = scmp.ne.s32.totalorder %s48, %s51
      %p57 = scmp.eq.s32.totalorder %s12, 0
      %p58 = por %p56, %p57
      %p59 = scmp.ne.s32.totalorder %s48, %s51
      %p60 = scmp.eq.s32.totalorder %s17, 2
      %p61 = por %p59, %p60
      %p62 = scmp.ne.s32.totalorder %s51, %s52
      %p63 = scmp.eq.s32.totalorder %s17, 0
      %p64 = por %p62, %p63
      %p65 = scmp.ne.s32.totalorder %s51, %s52
      %p66 = scmp.eq.s32.totalorder %s18, 2
      %p67 = por %p65, %p66
      %p69 = scmp.ne.s32.totalorder %s52, %s68
      %p70 = scmp.eq.s32.totalorder %s18, 0
      %p71 = por %p69, %p70
      %s72 = ssub.s32 %s12, %s19
      %p73 = scmp.eq.s32.totalorder %s72, 0
      %s75 = sadd.s32 %s74, 1
      %s76 = scalar_select %p73, %s74, %s75
      %p79 = pneg %p73
      %p80 = scmp.eq.s32.totalorder %s12, 2
      %p81 = por %p79, %p80
      %p82 = scmp.ne.s32.totalorder %s74, %s77
      %p83 = scmp.eq.s32.totalorder %s12, 0
      %p84 = por %p82, %p83
      %p85 = scmp.ne.s32.totalorder %s74, %s77
      %p86 = scmp.eq.s32.totalorder %s17, 2
      %p87 = por %p85, %p86
      %p88 = scmp.ne.s32.totalorder %s77, %s78
      %p89 = scmp.eq.s32.totalorder %s17, 0
      %p90 = por %p88, %p89
      %p91 = scmp.ne.s32.totalorder %s77, %s78
      %p92 = scmp.eq.s32.totalorder %s18, 2
      %p93 = por %p91, %p92
      %p95 = scmp.ne.s32.totalorder %s78, %s94
      %p96 = scmp.eq.s32.totalorder %s18, 0
      %p97 = por %p95, %p96
      %s98 = ssub.s32 %s12, %s19
      %p99 = scmp.eq.s32.totalorder %s98, 0
      %s101 = sadd.s32 %s100, 1
      %s102 = scalar_select %p99, %s100, %s101
      %p105 = pneg %p99
      %p106 = scmp.eq.s32.totalorder %s12, 2
      %p107 = por %p105, %p106
      %p108 = scmp.ne.s32.totalorder %s100, %s103
      %p109 = scmp.eq.s32.totalorder %s12, 0
      %p110 = por %p108, %p109
      %p111 = scmp.ne.s32.totalorder %s100, %s103
      %p112 = scmp.eq.s32.totalorder %s17, 2
      %p113 = por %p111, %p112
      %p114 = scmp.ne.s32.totalorder %s103, %s104
      %p115 = scmp.eq.s32.totalorder %s17, 0
      %p116 = por %p114, %p115
      %p117 = scmp.ne.s32.totalorder %s103, %s104
      %p118 = scmp.eq.s32.totalorder %s18, 2
      %p119 = por %p117, %p118
      %p121 = scmp.ne.s32.totalorder %s104, %s120
      %p122 = scmp.eq.s32.totalorder %s18, 0
      %p123 = por %p121, %p122
      %p124 = scmp.le.s32.totalorder 1, %s12
      %p125 = scmp.lt.s32.totalorder %s12, 4
      %p126 = pnand %p124, %p125
      %p127 = pneg %p126
      // Predicated region
      $region9: #{tpu_custom_call.1} parent=5 // pred_check
        _
      $region10: #{tpu_custom_call.1} parent=5 // pred_check_branch
        %129 = sbr.rel (%p126) target = $region12
      $region11: #{tpu_custom_call.1} parent=5 // pred_region
        %s130 = ssub.s32 %s12, 1
      $region12: #{tpu_custom_call.1} parent=5 // pred_fallthru
        _
      %p131 = scmp.lt.s32.totalorder %s12, 3
      // Predicated region
      $region13: #{tpu_custom_call.1} parent=5 // pred_check
        %p132 = pneg %p131
      $region14: #{tpu_custom_call.1} parent=5 // pred_check_branch
        %134 = sbr.rel (%p132) target = $region16
      $region15: #{tpu_custom_call.1} parent=5 // pred_region
        // Predicated region
        $region17: #{tpu_custom_call.1} parent=15 // pred_check
          %p135 = pneg %p32
        $region18: #{tpu_custom_call.1} parent=15 // pred_check_branch
          %137 = sbr.rel (%p135) target = $region20
        $region19: #{tpu_custom_call.1} parent=15 // pred_region
          %p138 = scmp.lt.s32.totalorder %s12, 2
          %s139 = scalar_select %p138, %s12, 2
          %s140 = smul.addr %s139, 8
          %s141 = scalar_lea.vmem %s0, %s140
        $region20: #{tpu_custom_call.1} parent=15 // pred_fallthru
          _
        // Predicated region
        $region21: #{tpu_custom_call.1} parent=15 // pred_check
          %p142 = pneg %p58
        $region22: #{tpu_custom_call.1} parent=15 // pred_check_branch
          %144 = sbr.rel (%p142) target = $region24
        $region23: #{tpu_custom_call.1} parent=15 // pred_region
          %p145 = scmp.lt.s32.totalorder %s12, 2
          %s146 = scalar_select %p145, %s12, 2
          %s147 = smul.addr %s146, 8
          %s148 = scalar_lea.vmem %s1, %s147
        $region24: #{tpu_custom_call.1} parent=15 // pred_fallthru
          _
        // Predicated region
        $region25: #{tpu_custom_call.1} parent=15 // pred_check
          %p149 = pneg %p84
        $region26: #{tpu_custom_call.1} parent=15 // pred_check_branch
          %151 = sbr.rel (%p149) target = $region28
        $region27: #{tpu_custom_call.1} parent=15 // pred_region
          %p152 = scmp.lt.s32.totalorder %s12, 2
          %s153 = scalar_select %p152, %s12, 2
          %s154 = smul.addr %s153, 8
          %s155 = scalar_lea.vmem %s2, %s154
        $region28: #{tpu_custom_call.1} parent=15 // pred_fallthru
          _
      $region16: #{tpu_custom_call.1} parent=5 // pred_fallthru
        _
      %p156 = scmp.le.s32.totalorder 1, %s12
      %p157 = scmp.lt.s32.totalorder %s12, 4
      %p158 = pnand %p156, %p157
      %p159 = pneg %p158
      // Predicated region
      $region29: #{tpu_custom_call.1} parent=5 // pred_check
        _
      $region30: #{tpu_custom_call.1} parent=5 // pred_check_branch
        %161 = sbr.rel (%p158) target = $region32
      $region31: #{tpu_custom_call.1} parent=5 // pred_region
        %s162 = ssub.s32 %s12, 1
        %p163 = scmp.lt.s32.totalorder %s17, 2
        %s164 = scalar_select %p163, %s17, 2
        %s165 = smul.addr %s164, 8
        %s166 = scalar_lea.vmem %s0, %s165
        %p167 = pneg %p38
        %p168 = pneg %p35
        %p169 = scmp.lt.s32.totalorder %s17, 2
        %s170 = scalar_select %p169, %s17, 2
        %s171 = smul.addr %s170, 8
        %s172 = scalar_lea.vmem %s1, %s171
        %p173 = pneg %p64
        %p174 = pneg %p61
        %p175 = scmp.lt.s32.totalorder %s17, 2
        %s176 = scalar_select %p175, %s17, 2
        %s177 = smul.addr %s176, 8
        %s178 = scalar_lea.vmem %s2, %s177
        %p179 = pneg %p90
        %p180 = pneg %p87
        %p181 = pneg %p116
        %p182 = pneg %p113
        %s183 = sand.u32 %s103, 1
        %s184 = scalar_lea.sflag [#allocation3], %s183
        %s185 = sand.u32 %s103, 1
        %s186 = scalar_lea.vmem [#allocation2], %s185
        %p187 = scmp.lt.s32.totalorder %s17, 2
        %s188 = scalar_select %p187, %s17, 2
        %s189 = smul.addr %s188, 8
        %s190 = scalar_lea.vmem %s0, %s189
        %p191 = scmp.lt.s32.totalorder %s17, 2
        %s192 = scalar_select %p191, %s17, 2
        %s193 = smul.addr %s192, 8
        %s194 = scalar_lea.vmem %s1, %s193
        %p195 = scmp.lt.s32.totalorder %s17, 2
        %s196 = scalar_select %p195, %s17, 2
        %s197 = smul.addr %s196, 8
        %s198 = scalar_lea.vmem %s2, %s197
        %v199 = vld [vmem:[%s190] sm:$0xff]
        %v200 = vld [vmem:[%s194] sm:$0xff]
        %v201 = vld [vmem:[%s198] sm:$0xff]
        %v202 = vlaneseq
        %v203 = vand.u32 %v202, 127
        %204 = vset.pattern.permute.xlu0 0
        %205 = vperm.xlu0 %204, %v200
        %v206 = vpop.permute.xlu0 %205
        %vm207 = vcmp.eq.s32.totalorder %v203, %v206
        %v208 = vsel %vm207, 1, 0
        %v209 = vcvt.s32.f32 %v208
        %v210 = vmul.f32 %v199, %v209
        %vm211 = vcmask 130048
        %v212 = vsel %vm211, %v210, 0.0
        %213 = vadd.xlane.f32.xlu0 %v212
        %v214 = vpop.xlane.xlu0 %213
        %v215 = vsub.f32 1.0, %v209
        %v216 = vmul.f32 %v199, %v215
        %v217 = vsel %vm211, %v216, -inf
        %218 = vmax.xlane.f32.xlu0 %v217
        %v219 = vpop.xlane.xlu0 %218
        %v220 = vsub.f32 %v201, %v219
        %v221 = vmax.f32 %v220, 0.0
        %v222 = vsub.f32 0.0, %v221
        %v223 = vsub.f32 %v222, 0.55
        %v224 = vmul.f32 %v223, 1.442695
        %v225 = vpow.pop %v224
        %vm226 = vcmp.gt.f32.partialorder %v221, 0.0
        %v227 = vsel %vm226, 1, 0
        %v228 = vcvt.s32.f32 %v227
        %v229 = vmul.f32 %v225, %v228
        %v230 = vsub.f32 %v219, %v201
        %v231 = vmax.f32 %v230, 0.0
        %v232 = vsub.f32 0.0, %v231
        %v233 = vsub.f32 %v232, 0.5
        %v234 = vmul.f32 %v233, 1.442695
        %v235 = vpow.pop %v234
        %vm236 = vcmp.gt.f32.partialorder %v231, 0.0
        %v237 = vsel %vm236, 1, 0
        %v238 = vcvt.s32.f32 %v237
        %v239 = vmul.f32 %v235, %v238
        %v240 = vadd.f32 %v229, %v239
        %v241 = vsub.f32 %v214, %v240
        %v242 = vmax.f32 %v219, %v241
        %v243 = vmul.f32 %v242, 30.0
        %245 = vset.pattern.permute.xlu0 0
        %246 = vperm.xlu0 %245, %v240
        %v247 = vpop.permute.xlu0 %246
        %v249 = vmul.f32 %v247, %v209
        %v250 = vsub.f32 %v199, %v249
        %v251 = vmul.f32 %v250, 30.0
        %253 = vset.pattern.permute.xlu0 0
        %254 = vperm.xlu0 %253, %v243
        %v255 = vpop.permute.xlu0 %254
        %v257 = vsub.f32 %v251, %v255
        %v258 = vmul.f32 %v257, 1.442695
        %v259 = vpow.pop %v258
        %v260 = vsel %vm211, %v259, 0.0
        %261 = vadd.xlane.f32.xlu0 %v260
        %v262 = vpop.xlane.xlu0 %261
        %v263 = vlog2.pop %v262
        %v264 = vmul.f32 %v263, 0.6931472
        %v265 = vadd.f32 %v243, %v264
        %v266 = vmul.f32 %v241, 30.0
        %v267 = vsub.f32 %v265, %v266
        %s268 = smul.u32 %s17, 8
        %v269 = vlaneseq
        %v270 = vshrl.u32 %v269, 7
        %v271 = vstv %s268
        %v272 = vadd.s32 %v271, %v270
        %vm273 = vcmp.lt.s32.totalorder %v272, 20
        %v274 = vsel %vm273, %v267, 0.0
        %vm275 = vcmask 7168
        %v276 = vsel %vm275, %v274, 0.0
        %v277 = vrot.slane %v276, 4
        %v278 = vadd.f32 %v276, %v277
        %v279 = vrot.slane %v278, 2
        %v280 = vadd.f32 %v278, %v279
        %v281 = vrot.slane %v280, 1
        %v282 = vadd.f32 %v280, %v281
        %284 = vset.pattern.permute.xlu0 0
        %285 = vperm.xlu0 %284, %v282
        %v286 = vpop.permute.xlu0 %285
        %288 = vst [vmem:[%s186] sm:$0x1] %v286
        %s289 = sand.u32 %s103, 1
        %s290 = scalar_lea.sflag [#allocation3], %s289
        %s291 = sand.u32 %s103, 1
        %s292 = scalar_lea.vmem [#allocation2], %s291
        // Predicated region
        $region33: #{tpu_custom_call.1} parent=31 // pred_check
          %p293 = pneg %p113
        $region34: #{tpu_custom_call.1} parent=31 // pred_check_branch
          %295 = sbr.rel (%p293) target = $region36
        $region35: #{tpu_custom_call.1} parent=31 // pred_region
          %s297 = ssub.s32 16, 16
          %298 = vsyncadd %s290, %s297
          %s299 = smul.addr %s17, 16
          %s300 = scalar_lea.hbm %s3, %s299
          %s302 = sshll.u32 %s292, 4
          %s303 = int_to_ptr.vmem [resolvable:$true] %s302
          %305 = dma.vmem_to_hbm [thread:$0]  %s303, 16, %s300, %s290
        $region36: #{tpu_custom_call.1} parent=31 // pred_fallthru
          _
      $region32: #{tpu_custom_call.1} parent=5 // pred_fallthru
        _
      %p306 = scmp.le.s32.totalorder 2, %s12
      // Predicated region
      $region37: #{tpu_custom_call.1} parent=5 // pred_check
        %p307 = pneg %p306
      $region38: #{tpu_custom_call.1} parent=5 // pred_check_branch
        %309 = sbr.rel (%p307) target = $region40
      $region39: #{tpu_custom_call.1} parent=5 // pred_region
        %s310 = ssub.s32 %s12, 2
        // Predicated region
        $region41: #{tpu_custom_call.1} parent=39 // pred_check
          %p311 = pneg %p119
        $region42: #{tpu_custom_call.1} parent=39 // pred_check_branch
          %313 = sbr.rel (%p311) target = $region44
        $region43: #{tpu_custom_call.1} parent=39 // pred_region
          %s314 = sand.u32 %s104, 1
          %s315 = scalar_lea.sflag [#allocation3], %s314
          %s316 = sand.u32 %s104, 1
          %s317 = scalar_lea.vmem [#allocation2], %s316
          %318 = dma.done %s315, 16
        $region44: #{tpu_custom_call.1} parent=39 // pred_fallthru
          _
      $region40: #{tpu_custom_call.1} parent=5 // pred_fallthru
        _
    $region6: #{tpu_custom_call.1} parent=1 // loop_footer
      %s16 = sadd.s32 1, %s12
    $region7: #{tpu_custom_call.1} parent=1 // loop_footer_branch
      %11 = sbr.rel target = $region3
    $region8: #{tpu_custom_call.1} parent=1 // loop_exit
      _
    %319 = vsyncpa [#allocation3], 1
    %s320 = scalar_lea.sflag [#allocation3], 1
    %321 = vsyncpa %s320, 1

</llo_original>
